<compile_context>
chip_gen: v7x
topology: tpu7x:2x2x1
jax: 0.10.0
libtpu: 0.0.40
codegen_flags: <defaults>
</compile_context>

<pallas_src>
import math

import jax
import jax.numpy as jnp
from jax import lax
from jax.experimental import pallas as pl
from jax.experimental.pallas import tpu as pltpu

_PI = math.pi
_HALF_PI = math.pi / 2.0
_INV_PI = 1.0 / math.pi
# arccos(x, n=5) series coefficients (matches the reference's factorial form):
# factorial(2i-1)/factorial(2i)/(2i+1) for i = 1..4
_ARCCOS_COEFFS = tuple(
    (math.factorial(2 * i - 1) / math.factorial(2 * i)) / (2 * i + 1) for i in range(1, 5)
)
# Class-axis padding value: (x-1)*s is hugely negative -> exp(.) == 0 in the LSE,
# and a padded class is never a target, so it never reaches the arccos series.
_NEG_PAD = -1e9


def _margin_loss_kernel(params_ref, cos_ref, label_ref, rowloss_ref, m_sc, l_sc, t_sc):
    # params: [m1, m2, m3, m4, s] in SMEM (read once per invocation)
    m1 = params_ref[0]
    m2 = params_ref[1]
    m3 = params_ref[2]
    m4 = params_ref[3]
    s = params_ref[4]

    k = pl.program_id(1)  # class-tile index (reduction axis, innermost)

    @pl.when(k == 0)
    def _():
        m_sc[...] = jnp.full_like(m_sc, -jnp.inf)   # running max
        l_sc[...] = jnp.zeros_like(l_sc)            # running sum of exp
        t_sc[...] = jnp.zeros_like(t_sc)            # target logit

    cos = cos_ref[...].astype(jnp.float32)          # (TILE_N, TILE_C) f32 compute
    labels = label_ref[...]                          # (TILE_N, 1) int32
    tn, tc = cos.shape

    # one_hot for THIS class tile: global class id = k*TILE_C + lane id
    class_ids = k * tc + lax.broadcasted_iota(jnp.int32, (tn, tc), 1)
    one_hot = class_ids == labels                    # (TILE_N, TILE_C) bool
    has_tgt = (labels >= k * tc) & (labels < (k + 1) * tc)   # (TILE_N, 1) bool

    # Gather the per-row target cos (0 if the target class is not in this tile).
    tgt_cos = jnp.sum(jnp.where(one_hot, cos, 0.0), axis=1, keepdims=True)  # (TILE_N, 1)

    # ---- margin math on the (TILE_N, 1) target column ONLY ----
    # arccos series: theta = pi/2 - x - sum_i c_i * x^(2i+1)
    x2 = tgt_cos * tgt_cos
    theta = _HALF_PI - tgt_cos
    p = tgt_cos
    for c in _ARCCOS_COEFFS:
        p = p * x2                                   # x^(2i+1)
        theta = theta - c * p
    # monocos(m1*theta + m2): cos(z - n*pi) - 2n, n = floor(z / pi)
    z = m1 * theta + m2
    n = jnp.floor(z * _INV_PI)                       # mul by 1/pi, not a divide
    mono = jnp.cos(z - n * _PI) - 2.0 * n
    cos_phi = m4 * (mono - m3 - 1.0)                 # (TILE_N, 1)
    tgt_logit = cos_phi * s                          # (TILE_N, 1)

    # margin-adjusted logits for this tile (splice target column back in)
    out = jnp.where(one_hot, tgt_logit, (cos - 1.0) * s)   # (TILE_N, TILE_C)

    # ---- online log-sum-exp update ----
    m_prev = m_sc[...]
    m_new = jnp.maximum(m_prev, jnp.max(out, axis=1, keepdims=True))
    l_sc[...] = jnp.exp(m_prev - m_new) * l_sc[...] + jnp.sum(
        jnp.exp(out - m_new), axis=1, keepdims=True)
    m_sc[...] = m_new
    # at most one class tile contributes the target logit per row
    # (out-of-range labels silently get no margin, same as the original kernel)
    t_sc[...] = t_sc[...] + jnp.where(has_tgt, tgt_logit, 0.0)

    @pl.when(k == pl.num_programs(1) - 1)
    def _():
        # per-row CE loss: logsumexp(out_row) - out_row[label]
        rowloss_ref[...] = m_sc[...] + jnp.log(l_sc[...]) - t_sc[...]


def _round_up(x, m):
    return ((x + m - 1) // m) * m


def margin_loss_with_parameter(pred, label, *, m1=1.0, m2=0.0, m3=0.0, m4=1.0, s=8.0):
    """pred: (N, C) float (kept in its native dtype over HBM); label: (N,) int.
    Returns scalar float32 loss (mean CE over the margin-adjusted logits)."""
    n_rows, n_classes = pred.shape

    # Tile sizes: lane-dense class tiles (multiple of 128), modest VMEM footprint
    # (<= 256 x 2048 f32 = 2 MiB per buffer) -> fits v5e/v6e/v7x comfortably.
    tile_n = min(_round_up(n_rows, 8), 256)
    tile_c = min(_round_up(n_classes, 128), 2048)
    n_pad = _round_up(n_rows, tile_n)
    c_pad = _round_up(n_classes, tile_c)

    # Pad classes with a large-negative cos (contributes exp()==0 to the LSE, never a
    # target), then pad rows with zeros (finite math; sliced off before the mean).
    pred_p = pred
    if c_pad != n_classes:
        pred_p = jnp.pad(pred_p, ((0, 0), (0, c_pad - n_classes)),
                         constant_values=_NEG_PAD)
    if n_pad != n_rows:
        pred_p = jnp.pad(pred_p, ((0, n_pad - n_rows), (0, 0)), constant_values=0.0)

    label_p = label.astype(jnp.int32).reshape(n_rows, 1)
    if n_pad != n_rows:
        label_p = jnp.pad(label_p, ((0, n_pad - n_rows), (0, 0)), constant_values=0)

    params = jnp.array([m1, m2, m3, m4, s], dtype=jnp.float32)

    grid = (n_pad // tile_n, c_pad // tile_c)
    grid_spec = pltpu.PrefetchScalarGridSpec(
        num_scalar_prefetch=0,
        grid=grid,
        in_specs=[
            pl.BlockSpec(memory_space=pltpu.MemorySpace.SMEM),        # params (5,)
            pl.BlockSpec((tile_n, tile_c), lambda i, k: (i, k)),      # pred tile (native dtype)
            pl.BlockSpec((tile_n, 1), lambda i, k: (i, 0)),           # labels
        ],
        out_specs=pl.BlockSpec((tile_n, 1), lambda i, k: (i, 0)),     # per-row losses
        scratch_shapes=[
            pltpu.VMEM((tile_n, 1), jnp.float32),   # running max  m_i
            pltpu.VMEM((tile_n, 1), jnp.float32),   # running sum  l_i
            pltpu.VMEM((tile_n, 1), jnp.float32),   # target logit
        ],
    )

    row_losses = pl.pallas_call(
        _margin_loss_kernel,
        out_shape=jax.ShapeDtypeStruct((n_pad, 1), jnp.float32),
        grid_spec=grid_spec,
        compiler_params=pltpu.CompilerParams(
            dimension_semantics=("parallel", "arbitrary"),
            vmem_limit_bytes=32 * 1024 * 1024,
        ),
    )(params, pred_p, label_p)

    # Mean over the REAL rows only (padded rows sliced off); tiny XLA reduce.
    return jnp.sum(row_losses[:n_rows, 0]) / n_rows


def _reference_loss(pred, label, *, m1=1.0, m2=0.0, m3=0.0, m4=1.0, s=8.0):
    """Pure-JAX reference matching the PyTorch module's forward."""
    pred = pred.astype(jnp.float32)
    n, c = pred.shape
    one_hot = label[:, None].astype(jnp.int32) == jnp.arange(c, dtype=jnp.int32)[None, :]
    theta = _HALF_PI - pred
    p = pred
    for coef in _ARCCOS_COEFFS:
        p = p * pred * pred
        theta = theta - coef * p
    z = m1 * theta + m2
    k = jnp.floor(z / _PI)
    cos_phi = m4 * ((jnp.cos(z - k * _PI) - 2.0 * k) - m3 - 1.0)
    out = jnp.where(one_hot, cos_phi, pred - 1.0) * s
    lse = jax.scipy.special.logsumexp(out, axis=1)
    tgt = jnp.take_along_axis(out, label[:, None].astype(jnp.int32), axis=1)[:, 0]
    return jnp.mean(lse - tgt)


if __name__ == "__main__":
    key = jax.random.PRNGKey(0)
    k1, k2, k3, k4 = jax.random.split(key, 4)

    # Case 1: small f32 problem matching the module (batch=8, num_classes=16).
    N, C = 8, 16
    pred = jax.random.uniform(k1, (N, C), dtype=jnp.float32, minval=-1.0, maxval=1.0)
    gt = jax.random.randint(k2, (N,), 0, C)
    loss = margin_loss_with_parameter(pred, gt, m1=1.0, m2=0.0, m3=0.0, m4=1.0, s=8.0)
    jax.block_until_ready(loss)
    ref = _reference_loss(pred, gt)
    assert jnp.isfinite(loss), float(loss)
    assert abs(float(loss) - float(ref)) < 2e-3, (float(loss), float(ref))

    # Case 2: bf16 pred with non-aligned N, C to exercise native-dtype DMA + padding.
    N2, C2 = 10, 40
    pred2 = jax.random.uniform(k3, (N2, C2), dtype=jnp.float32,
                               minval=-1.0, maxval=1.0).astype(jnp.bfloat16)
    gt2 = jax.random.randint(k4, (N2,), 0, C2)
    loss2 = margin_loss_with_parameter(pred2, gt2, m1=1.0, m2=0.0, m3=0.0, m4=1.0, s=8.0)
    jax.block_until_ready(loss2)
    ref2 = _reference_loss(pred2, gt2)
    assert jnp.isfinite(loss2), float(loss2)
    assert abs(float(loss2) - float(ref2)) < 2e-3, (float(loss2), float(ref2))

    print("KERNEL_OK")
</pallas_src>

<mosaic_0001>
module attributes {stable_mosaic.version = 11 : i64} {
  func.func @_margin_loss_kernel(%arg0: i32, %arg1: i32, %arg2: memref<5xf32, #tpu.memory_space<smem>>, %arg3: memref<8x128xf32, #tpu.memory_space<vmem>>, %arg4: memref<8x1xi32, #tpu.memory_space<vmem>>, %arg5: memref<8x1xf32, #tpu.memory_space<vmem>>, %arg6: memref<8x1xf32, #tpu.memory_space<vmem>>, %arg7: memref<8x1xf32, #tpu.memory_space<vmem>>, %arg8: memref<8x1xf32, #tpu.memory_space<vmem>>) attributes {dimension_semantics = [#tpu.dimension_semantics<parallel>, #tpu.dimension_semantics<arbitrary>], iteration_bounds = array<i64: 1, 1>, scalar_prefetch = 0 : i64, scratch_operands = 3 : i64, tpu.core_type = #tpu.core_type<tc>, window_params = [{transform_indices = @transform_0, window_bounds = array<i64: 5>}, {transform_indices = @transform_1, window_bounds = array<i64: 8, 128>}, {transform_indices = @transform_2, window_bounds = array<i64: 8, 1>}, {transform_indices = @transform_3, window_bounds = array<i64: 8, 1>}]} {
    %c0 = arith.constant 0 : index
    %0 = memref.load %arg2[%c0] : memref<5xf32, #tpu.memory_space<smem>>
    %c1 = arith.constant 1 : index
    %1 = memref.load %arg2[%c1] : memref<5xf32, #tpu.memory_space<smem>>
    %c2 = arith.constant 2 : index
    %2 = memref.load %arg2[%c2] : memref<5xf32, #tpu.memory_space<smem>>
    %c3 = arith.constant 3 : index
    %3 = memref.load %arg2[%c3] : memref<5xf32, #tpu.memory_space<smem>>
    %c4 = arith.constant 4 : index
    %4 = memref.load %arg2[%c4] : memref<5xf32, #tpu.memory_space<smem>>
    %c0_i32 = arith.constant 0 : i32
    %5 = arith.cmpi eq, %arg1, %c0_i32 : i32
    %6 = arith.extui %5 : i1 to i32
    %c0_i32_0 = arith.constant 0 : i32
    %7 = arith.cmpi ne, %6, %c0_i32_0 : i32
    scf.if %7 {
      %cst_35 = arith.constant 0xFF800000 : f32
      %100 = vector.broadcast %cst_35 : f32 to vector<8x1xf32>
      %c0_36 = arith.constant 0 : index
      %c0_37 = arith.constant 0 : index
      %101 = vector.load %arg6[%c0_36, %c0_37] : memref<8x1xf32, #tpu.memory_space<vmem>>, vector<8x1xf32>
      tpu.vector_store %arg6[%c0_36, %c0_37], %100 {strides = array<i32>} : memref<8x1xf32, #tpu.memory_space<vmem>>, vector<8x1xf32>,
      %cst_38 = arith.constant 0.000000e+00 : f32
      %102 = vector.broadcast %cst_38 : f32 to vector<8x1xf32>
      %c0_39 = arith.constant 0 : index
      %c0_40 = arith.constant 0 : index
      %103 = vector.load %arg7[%c0_39, %c0_40] : memref<8x1xf32, #tpu.memory_space<vmem>>, vector<8x1xf32>
      tpu.vector_store %arg7[%c0_39, %c0_40], %102 {strides = array<i32>} : memref<8x1xf32, #tpu.memory_space<vmem>>, vector<8x1xf32>,
      %cst_41 = arith.constant 0.000000e+00 : f32
      %104 = vector.broadcast %cst_41 : f32 to vector<8x1xf32>
      %c0_42 = arith.constant 0 : index
      %c0_43 = arith.constant 0 : index
      %105 = vector.load %arg8[%c0_42, %c0_43] : memref<8x1xf32, #tpu.memory_space<vmem>>, vector<8x1xf32>
      tpu.vector_store %arg8[%c0_42, %c0_43], %104 {strides = array<i32>} : memref<8x1xf32, #tpu.memory_space<vmem>>, vector<8x1xf32>,
    } else {
    }
    %c0_1 = arith.constant 0 : index
    %c0_2 = arith.constant 0 : index
    %8 = vector.load %arg3[%c0_1, %c0_2] : memref<8x128xf32, #tpu.memory_space<vmem>>, vector<8x128xf32>
    %c0_3 = arith.constant 0 : index
    %c0_4 = arith.constant 0 : index
    %9 = vector.load %arg4[%c0_3, %c0_4] : memref<8x1xi32, #tpu.memory_space<vmem>>, vector<8x1xi32>
    %c128_i32 = arith.constant 128 : i32
    %10 = arith.muli %arg1, %c128_i32 : i32
    %11 = tpu.iota {dimensions = array<i32: 1>} : vector<8x128xi32>
    %12 = vector.broadcast %10 : i32 to vector<8x128xi32>
    %13 = arith.addi %12, %11 : vector<8x128xi32>
    %14 = vector.broadcast %9 : vector<8x1xi32> to vector<8x128xi32>
    %15 = arith.cmpi eq, %13, %14 : vector<8x128xi32>
    %c128_i32_5 = arith.constant 128 : i32
    %16 = arith.muli %arg1, %c128_i32_5 : i32
    %17 = vector.broadcast %16 : i32 to vector<8x1xi32>
    %18 = arith.cmpi sge, %9, %17 : vector<8x1xi32>
    %c1_i32 = arith.constant 1 : i32
    %19 = arith.addi %arg1, %c1_i32 : i32
    %c128_i32_6 = arith.constant 128 : i32
    %20 = arith.muli %19, %c128_i32_6 : i32
    %21 = vector.broadcast %20 : i32 to vector<8x1xi32>
    %22 = arith.cmpi slt, %9, %21 : vector<8x1xi32>
    %23 = arith.andi %18, %22 : vector<8x1xi1>
    %cst = arith.constant 0.000000e+00 : f32
    %24 = vector.broadcast %cst : f32 to vector<8x128xf32>
    %25 = arith.select %15, %8, %24 : vector<8x128xi1>, vector<8x128xf32>
    %cst_7 = arith.constant dense<0.000000e+00> : vector<8xf32>
    %26 = vector.multi_reduction <add>, %25, %cst_7 [1] : vector<8x128xf32> to vector<8xf32>
    %27 = vector.shape_cast %26 : vector<8xf32> to vector<8x1xf32>
    %28 = arith.mulf %27, %27 : vector<8x1xf32>
    %cst_8 = arith.constant 1.57079637 : f32
    %29 = vector.broadcast %cst_8 : f32 to vector<8x1xf32>
    %30 = arith.subf %29, %27 : vector<8x1xf32>
    %31 = arith.mulf %27, %28 : vector<8x1xf32>
    %cst_9 = arith.constant 0.166666672 : f32
    %32 = vector.broadcast %cst_9 : f32 to vector<8x1xf32>
    %33 = arith.mulf %32, %31 : vector<8x1xf32>
    %34 = arith.subf %30, %33 : vector<8x1xf32>
    %35 = arith.mulf %31, %28 : vector<8x1xf32>
    %cst_10 = arith.constant 5.000000e-02 : f32
    %36 = vector.broadcast %cst_10 : f32 to vector<8x1xf32>
    %37 = arith.mulf %36, %35 : vector<8x1xf32>
    %38 = arith.subf %34, %37 : vector<8x1xf32>
    %39 = arith.mulf %35, %28 : vector<8x1xf32>
    %cst_11 = arith.constant 0.0238095243 : f32
    %40 = vector.broadcast %cst_11 : f32 to vector<8x1xf32>
    %41 = arith.mulf %40, %39 : vector<8x1xf32>
    %42 = arith.subf %38, %41 : vector<8x1xf32>
    %43 = arith.mulf %39, %28 : vector<8x1xf32>
    %cst_12 = arith.constant 0.013888889 : f32
    %44 = vector.broadcast %cst_12 : f32 to vector<8x1xf32>
    %45 = arith.mulf %44, %43 : vector<8x1xf32>
    %46 = arith.subf %42, %45 : vector<8x1xf32>
    %47 = vector.broadcast %0 : f32 to vector<8x1xf32>
    %48 = arith.mulf %47, %46 : vector<8x1xf32>
    %49 = vector.broadcast %1 : f32 to vector<8x1xf32>
    %50 = arith.addf %48, %49 : vector<8x1xf32>
    %cst_13 = arith.constant 0.318309873 : f32
    %51 = vector.broadcast %cst_13 : f32 to vector<8x1xf32>
    %52 = arith.mulf %50, %51 : vector<8x1xf32>
    %53 = math.floor %52 : vector<8x1xf32>
    %cst_14 = arith.constant 3.14159274 : f32
    %54 = vector.broadcast %cst_14 : f32 to vector<8x1xf32>
    %55 = arith.mulf %53, %54 : vector<8x1xf32>
    %56 = arith.subf %50, %55 : vector<8x1xf32>
    %57 = math.cos %56 : vector<8x1xf32>
    %cst_15 = arith.constant 2.000000e+00 : f32
    %58 = vector.broadcast %cst_15 : f32 to vector<8x1xf32>
    %59 = arith.mulf %58, %53 : vector<8x1xf32>
    %60 = arith.subf %57, %59 : vector<8x1xf32>
    %61 = vector.broadcast %2 : f32 to vector<8x1xf32>
    %62 = arith.subf %60, %61 : vector<8x1xf32>
    %cst_16 = arith.constant 1.000000e+00 : f32
    %63 = vector.broadcast %cst_16 : f32 to vector<8x1xf32>
    %64 = arith.subf %62, %63 : vector<8x1xf32>
    %65 = vector.broadcast %3 : f32 to vector<8x1xf32>
    %66 = arith.mulf %65, %64 : vector<8x1xf32>
    %67 = vector.broadcast %4 : f32 to vector<8x1xf32>
    %68 = arith.mulf %66, %67 : vector<8x1xf32>
    %cst_17 = arith.constant 1.000000e+00 : f32
    %69 = vector.broadcast %cst_17 : f32 to vector<8x128xf32>
    %70 = arith.subf %8, %69 : vector<8x128xf32>
    %71 = vector.broadcast %4 : f32 to vector<8x128xf32>
    %72 = arith.mulf %70, %71 : vector<8x128xf32>
    %73 = vector.shape_cast %68 : vector<8x1xf32> to vector<8x1xf32>
    %74 = vector.broadcast %73 : vector<8x1xf32> to vector<8x128xf32>
    %75 = arith.select %15, %74, %72 : vector<8x128xi1>, vector<8x128xf32>
    %c0_18 = arith.constant 0 : index
    %c0_19 = arith.constant 0 : index
    %76 = vector.load %arg6[%c0_18, %c0_19] : memref<8x1xf32, #tpu.memory_space<vmem>>, vector<8x1xf32>
    %cst_20 = arith.constant dense<0xFF800000> : vector<8xf32>
    %77 = vector.multi_reduction <maximumf>, %75, %cst_20 [1] : vector<8x128xf32> to vector<8xf32>
    %78 = vector.shape_cast %77 : vector<8xf32> to vector<8x1xf32>
    %79 = arith.maximumf %76, %78 : vector<8x1xf32>
    %80 = arith.subf %76, %79 : vector<8x1xf32>
    %81 = math.exp %80 : vector<8x1xf32>
    %c0_21 = arith.constant 0 : index
    %c0_22 = arith.constant 0 : index
    %82 = vector.load %arg7[%c0_21, %c0_22] : memref<8x1xf32, #tpu.memory_space<vmem>>, vector<8x1xf32>
    %83 = arith.mulf %81, %82 : vector<8x1xf32>
    %84 = vector.broadcast %79 : vector<8x1xf32> to vector<8x128xf32>
    %85 = arith.subf %75, %84 : vector<8x128xf32>
    %86 = math.exp %85 : vector<8x128xf32>
    %cst_23 = arith.constant dense<0.000000e+00> : vector<8xf32>
    %87 = vector.multi_reduction <add>, %86, %cst_23 [1] : vector<8x128xf32> to vector<8xf32>
    %88 = vector.shape_cast %87 : vector<8xf32> to vector<8x1xf32>
    %89 = arith.addf %83, %88 : vector<8x1xf32>
    %c0_24 = arith.constant 0 : index
    %c0_25 = arith.constant 0 : index
    %90 = vector.load %arg7[%c0_24, %c0_25] : memref<8x1xf32, #tpu.memory_space<vmem>>, vector<8x1xf32>
    tpu.vector_store %arg7[%c0_24, %c0_25], %89 {strides = array<i32>} : memref<8x1xf32, #tpu.memory_space<vmem>>, vector<8x1xf32>,
    %c0_26 = arith.constant 0 : index
    %c0_27 = arith.constant 0 : index
    %91 = vector.load %arg6[%c0_26, %c0_27] : memref<8x1xf32, #tpu.memory_space<vmem>>, vector<8x1xf32>
    tpu.vector_store %arg6[%c0_26, %c0_27], %79 {strides = array<i32>} : memref<8x1xf32, #tpu.memory_space<vmem>>, vector<8x1xf32>,
    %c0_28 = arith.constant 0 : index
    %c0_29 = arith.constant 0 : index
    %92 = vector.load %arg8[%c0_28, %c0_29] : memref<8x1xf32, #tpu.memory_space<vmem>>, vector<8x1xf32>
    %cst_30 = arith.constant 0.000000e+00 : f32
    %93 = vector.broadcast %cst_30 : f32 to vector<8x1xf32>
    %94 = arith.select %23, %68, %93 : vector<8x1xi1>, vector<8x1xf32>
    %95 = arith.addf %92, %94 : vector<8x1xf32>
    %c0_31 = arith.constant 0 : index
    %c0_32 = arith.constant 0 : index
    %96 = vector.load %arg8[%c0_31, %c0_32] : memref<8x1xf32, #tpu.memory_space<vmem>>, vector<8x1xf32>
    tpu.vector_store %arg8[%c0_31, %c0_32], %95 {strides = array<i32>} : memref<8x1xf32, #tpu.memory_space<vmem>>, vector<8x1xf32>,
    %c0_i32_33 = arith.constant 0 : i32
    %97 = arith.cmpi eq, %arg1, %c0_i32_33 : i32
    %98 = arith.extui %97 : i1 to i32
    %c0_i32_34 = arith.constant 0 : i32
    %99 = arith.cmpi ne, %98, %c0_i32_34 : i32
    scf.if %99 {
      %c0_35 = arith.constant 0 : index
      %c0_36 = arith.constant 0 : index
      %100 = vector.load %arg6[%c0_35, %c0_36] : memref<8x1xf32, #tpu.memory_space<vmem>>, vector<8x1xf32>
      %c0_37 = arith.constant 0 : index
      %c0_38 = arith.constant 0 : index
      %101 = vector.load %arg7[%c0_37, %c0_38] : memref<8x1xf32, #tpu.memory_space<vmem>>, vector<8x1xf32>
      %102 = math.log %101 : vector<8x1xf32>
      %103 = arith.addf %100, %102 : vector<8x1xf32>
      %c0_39 = arith.constant 0 : index
      %c0_40 = arith.constant 0 : index
      %104 = vector.load %arg8[%c0_39, %c0_40] : memref<8x1xf32, #tpu.memory_space<vmem>>, vector<8x1xf32>
      %105 = arith.subf %103, %104 : vector<8x1xf32>
      %c0_41 = arith.constant 0 : index
      %c0_42 = arith.constant 0 : index
      %106 = vector.load %arg5[%c0_41, %c0_42] : memref<8x1xf32, #tpu.memory_space<vmem>>, vector<8x1xf32>
      tpu.vector_store %arg5[%c0_41, %c0_42], %105 {strides = array<i32>} : memref<8x1xf32, #tpu.memory_space<vmem>>, vector<8x1xf32>,
    } else {
    }
    return
  }
  func.func @transform_0(%arg0: i32, %arg1: i32) -> i32 {
    %c0_i32 = arith.constant 0 : i32
    %c0_i32_0 = arith.constant 0 : i32
    return %c0_i32 : i32
  }
  func.func @transform_1(%arg0: i32, %arg1: i32) -> (i32, i32) {
    %c0_i32 = arith.constant 0 : i32
    return %arg0, %arg1 : i32, i32
  }
  func.func @transform_2(%arg0: i32, %arg1: i32) -> (i32, i32) {
    %c0_i32 = arith.constant 0 : i32
    %c0_i32_0 = arith.constant 0 : i32
    return %arg0, %c0_i32 : i32, i32
  }
  func.func @transform_3(%arg0: i32, %arg1: i32) -> (i32, i32) {
    %c0_i32 = arith.constant 0 : i32
    %c0_i32_0 = arith.constant 0 : i32
    return %arg0, %c0_i32 : i32, i32
  }
}

</mosaic_0001>

<llo_original>
// kernel: tpu_custom_call.1
$region0: #{tpu_custom_call.1}
  #allocation0 [shape = 'u32[]', space=smem, size = 0x4, offset = 0x4, fixed_abs, tag = 'smem constant byte address 0x4 - core index']
  #allocation1 [shape = 'u32[144,128]{1,0:T(1,128)}', space=vmem, size = 0x12000, scoped, tag = 'internal scratch']
  #allocation2 [shape = 'f32[8,1]{1,0:T(8,128)}', space=vmem, size = 0x1000, scoped, tag = 'scratch operand']
  #allocation3 [shape = 'f32[8,1]{1,0:T(8,128)}', space=vmem, size = 0x1000, scoped, tag = 'scratch operand']
  #allocation4 [shape = 'f32[8,1]{1,0:T(8,128)}', space=vmem, size = 0x1000, scoped, tag = 'scratch operand']
  %s0 = inlined_call_operand.vmem [shape: f32[5], index: 0, kind: input, shape index: {}]
  %s1 = inlined_call_operand.vmem [shape: f32[8,128], index: 1, kind: input, shape index: {}]
  %s2 = inlined_call_operand.vmem [shape: s32[8,1], index: 2, kind: input, shape index: {}]
  %s3 = inlined_call_operand.vmem [shape: f32[8,1], index: 3, kind: output, shape index: {}]
  %s4 = sld [smem:[#allocation0]]
  $region34: #{tpu_custom_call.1} parent=0
    _
  %s6 = ssub.s32 1, %s4
  %s7 = scalar_select 0, %s6, %s4
  $region1: #{tpu_custom_call.1} parent=0
    #allocation5 [shape = 'u8[512]{0}', space=smem, size = 0x200, scoped, tag = 'input window, operand 0, single buffered']
    #allocation6 [shape = 's32[1]{0}', space=sflag, size = 0x4, scoped, tag = 'scoped memory for tpu_custom_call.1']
    %8 = vsyncpa [#allocation6], 0
    // Predicated region
    $region2: #{tpu_custom_call.1} parent=1 // pred_check
      _
    $region3: #{tpu_custom_call.1} parent=1 // pred_check_branch
      %10 = sbr.rel (0) target = $region5
    $region4: #{tpu_custom_call.1} parent=1 // pred_region
      %s12 = ssub.s32 16, 16
      %13 = vsyncadd [#allocation6], %s12
      %s15 = sshll.u32 %s0, 4
      %s16 = int_to_ptr.vmem [resolvable:$true] %s15
      %18 = dma.vmem_to_smem %s16, 16, [#allocation5], [#allocation6]
    $region5: #{tpu_custom_call.1} parent=1 // pred_fallthru
      _
    // Predicated region
    $region6: #{tpu_custom_call.1} parent=1 // pred_check
      _
    $region7: #{tpu_custom_call.1} parent=1 // pred_check_branch
      %20 = sbr.rel (0) target = $region9
    $region8: #{tpu_custom_call.1} parent=1 // pred_region
      _
    $region9: #{tpu_custom_call.1} parent=1 // pred_fallthru
      _
    // Predicated region
    $region10: #{tpu_custom_call.1} parent=1 // pred_check
      _
    $region11: #{tpu_custom_call.1} parent=1 // pred_check_branch
      %22 = sbr.rel (0) target = $region13
    $region12: #{tpu_custom_call.1} parent=1 // pred_region
      _
    $region13: #{tpu_custom_call.1} parent=1 // pred_fallthru
      _
    // Predicated region
    $region14: #{tpu_custom_call.1} parent=1 // pred_check
      _
    $region15: #{tpu_custom_call.1} parent=1 // pred_check_branch
      %24 = sbr.rel (0) target = $region17
    $region16: #{tpu_custom_call.1} parent=1 // pred_region
      %25 = dma.done [#allocation6], 16
    $region17: #{tpu_custom_call.1} parent=1 // pred_fallthru
      _
    %26 = sfence
    %s27 = sld [smem:[#allocation5]]
    %s28 = sld [smem:[#allocation5 + $0x1]]
    %s29 = sld [smem:[#allocation5 + $0x2]]
    %s30 = sld [smem:[#allocation5 + $0x3]]
    %s31 = sld [smem:[#allocation5 + $0x4]]
    %p32 = scmp.eq.s32.totalorder 0, 0
    // Predicated region
    $region18: #{tpu_custom_call.1} parent=1 // pred_check
      %p33 = pneg %p32
    $region19: #{tpu_custom_call.1} parent=1 // pred_check_branch
      %35 = sbr.rel (%p33) target = $region21
    $region20: #{tpu_custom_call.1} parent=1 // pred_region
      %vm36 = vcmask 7168
      %37 = vst.msk [vmem:[#allocation2] sm:$0xff] %vm36, -inf
      %38 = vst.msk [vmem:[#allocation3] sm:$0xff] %vm36, 0.0
      %39 = vst.msk [vmem:[#allocation4] sm:$0xff] %vm36, 0.0
    $region21: #{tpu_custom_call.1} parent=1 // pred_fallthru
      _
    %v40 = vld [vmem:[%s1] sm:$0xff]
    %v41 = vld [vmem:[%s2] sm:$0xff]
    %s42 = smul.u32 0, 128
    %v43 = vlaneseq
    %v44 = vand.u32 %v43, 127
    %v45 = vstv %s42
    %v46 = vadd.s32 %v45, %v44
    %47 = vset.pattern.permute.xlu0 0
    %48 = vperm.xlu0 %47, %v41
    %v49 = vpop.permute.xlu0 %48
    %vm50 = vcmp.eq.s32.totalorder %v46, %v49
    %vm51 = vcmp.ge.s32.totalorder %v41, %v45
    %s52 = sadd.s32 0, 1
    %s53 = smul.u32 %s52, 128
    %v54 = vstv %s53
    %vm55 = vcmp.lt.s32.totalorder %v41, %v54
    %vm56 = vmand %vm51, %vm55
    %v57 = vsel %vm50, %v40, 0.0
    %58 = vadd.xlane.f32.xlu0 %v57
    %v59 = vpop.xlane.xlu0 %58
    %v60 = vmul.f32 %v59, %v59
    %v61 = vsub.f32 1.5707964, %v59
    %v62 = vmul.f32 %v59, %v60
    %v63 = vmul.f32 %v62, 0.16666667
    %v64 = vsub.f32 %v61, %v63
    %v65 = vmul.f32 %v62, %v60
    %v66 = vmul.f32 %v65, 0.05
    %v67 = vsub.f32 %v64, %v66
    %v68 = vmul.f32 %v65, %v60
    %v69 = vmul.f32 %v68, 0.023809524
    %v70 = vsub.f32 %v67, %v69
    %v71 = vmul.f32 %v68, %v60
    %v72 = vmul.f32 %v71, 0.013888889
    %v73 = vsub.f32 %v70, %v72
    %v74 = vstv %s27
    %v75 = vmul.f32 %v74, %v73
    %v76 = vstv %s28
    %v77 = vadd.f32 %v75, %v76
    %v78 = vmul.f32 %v77, 0.31830987
    %v79 = vfloor.f32 %v78
    %v80 = vmul.f32 %v79, 3.1415927
    %v81 = vsub.f32 %v77, %v80
    %v82 = vand.u32 2147483647, %v81
    %vm83 = vcmp.le.f32.partialorder %v82, 0.7853982
    %vm84 = vcmp.lt.s32.totalorder %v81, 0
    %v85 = vand.u32 %v81, 2139095040
    %v86 = vshrl.u32 %v85, 23
    %v87 = vsub.s32 %v86, 127
    %v88 = vand.u32 2147483647, %v81
    %v89 = vand.u32 %v88, 8388607
    %v90 = vor.u32 %v89, 8388608
    %v91 = vsub.s32 0, %v90
    %v92 = vadd.s32 %v87, 1
    %vm93 = vcmp.gt.s32.totalorder %v92, 0
    %v94 = vsel %vm93, %v92, 0
    %v95 = vshrl.u32 %v94, 5
    %v96 = vand.u32 %v94, 31
    %v97 = vsub.s32 32, %v96
    %v98 = vshrl.u32 683565275, %v97
    %v99 = vshll.u32 683565275, %v96
    %v100 = vshrl.u32 2475754826, %v97
    %v101 = vor.u32 %v99, %v100
    %v102 = vshll.u32 2475754826, %v96
    %v103 = vshrl.u32 2131351028, %v97
    %v104 = vor.u32 %v102, %v103
    %v105 = vshll.u32 2131351028, %v96
    %v106 = vshrl.u32 2102212464, %v97
    %v107 = vor.u32 %v105, %v106
    %v108 = vshll.u32 2102212464, %v96
    %v109 = vshrl.u32 920167782, %v97
    %v110 = vor.u32 %v108, %v109
    %v111 = vshll.u32 920167782, %v96
    %v112 = vshrl.u32 1326507024, %v97
    %v113 = vor.u32 %v111, %v112
    %vm114 = vcmp.lt.s32.totalorder %v95, 1
    %vm115 = vcmp.lt.s32.totalorder %v95, 2
    %vm116 = vcmp.lt.s32.totalorder %v95, 3
    %vm117 = vcmp.lt.s32.totalorder %v95, 4
    %v118 = vsel %vm114, %v98, %v101
    %v119 = vsel %vm117, %v107, 2102212464
    %v120 = vsel %vm116, %v104, %v119
    %v121 = vsel %vm115, %v118, %v120
    %v122 = vsel %vm114, %v101, %v104
    %v123 = vsel %vm117, %v110, 920167782
    %v124 = vsel %vm116, %v107, %v123
    %v125 = vsel %vm115, %v122, %v124
    %v126 = vsel %vm114, %v104, %v107
    %v127 = vsel %vm117, %v113, 1326507024
    %v128 = vsel %vm116, %v110, %v127
    %v129 = vsel %vm115, %v126, %v128
    %v130 = vshll.u32 %v90, 8
    %v131 = vmul.u32.u64.compose %v130, %v129
    %v132 = vextract.low.u32 %v131
    %v133 = vextract.high.u32 %v131
    %v134 = vmul.u32.u64.compose %v130, %v125
    %v135 = vextract.low.u32 %v134
    %v136 = vextract.high.u32 %v134
    %v137 = vmul.u32 %v130, %v121
    %v138 = vadd.s32 %v133, %v135
    %vm139 = vc.u32 %v133, %v135
    %v140 = vadd.s32 %v136, 1
    %v141 = vsel %vm139, %v140, %v136
    %v142 = vadd.s32 %v137, %v141
    %v143 = vadd.s32 %v142, 536870912
    %v144 = vshrl.u32 %v143, 30
    %v145 = vshll.u32 %v144, 30
    %v146 = vsub.s32 %v142, %v145
    %vm147 = vcmp.lt.s32.totalorder %v146, 0
    %v148 = vsub.s32 0, %v146
    %v149 = vsel %vm147, %v148, %v146
    %v150 = vclz %v149
    %v151 = vsub.s32 %v150, 2
    %vm152 = vcmp.gt.s32.totalorder 0, %v151
    %v153 = vsel %vm152, 0, %v151
    %v154 = vsub.s32 32, %v153
    %v155 = vshll.u32 %v146, %v153
    %v156 = vshrl.u32 %v138, %v154
    %v157 = vor.u32 %v155, %v156
    %v158 = vsub.s32 4294967266, %v153
    %v159 = vadd.s32 %v158, 127
    %v160 = vshll.u32 %v159, 23
    %v161 = vor.u32 4788187, %v160
    %v162 = vand.u32 2147483647, %v161
    %v164 = vcvt.s32.f32 %v157
    %v165 = vmul.f32 %v164, %v162
    %v166 = vxor.u32 %v165, 2147483648
    %v167 = vsel %vm84, %v166, %v165
    %v168 = vsub.s32 4, %v144
    %v169 = vsel %vm84, %v168, %v144
    %v170 = vsel %vm83, %v81, %v167
    %v171 = vsel %vm83, 0, %v169
    %v172 = vcosq.f32.pop %v170
    %v173 = vsinq.f32.pop %v170
    %vm174 = vweird.f32 %v81
    %v175 = vand.u32 %v171, 3
    %vm176 = vcmp.lt.s32.totalorder %v175, 2
    %vm177 = vcmp.eq.s32.totalorder %v175, 0
    %v178 = vxor.u32 %v173, 2147483648
    %v179 = vsel %vm177, %v172, %v178
    %vm180 = vcmp.eq.s32.totalorder %v175, 2
    %v181 = vxor.u32 %v172, 2147483648
    %v182 = vsel %vm180, %v181, %v173
    %v183 = vsel %vm176, %v179, %v182
    %v184 = vsel %vm174, nan, %v183
    %v185 = vmul.f32 %v79, 2.0
    %v186 = vsub.f32 %v184, %v185
    %v187 = vstv %s29
    %v188 = vsub.f32 %v186, %v187
    %v189 = vsub.f32 %v188, 1.0
    %v190 = vstv %s30
    %v191 = vmul.f32 %v190, %v189
    %v192 = vstv %s31
    %v193 = vmul.f32 %v191, %v192
    %v194 = vsub.f32 %v40, 1.0
    %v195 = vmul.f32 %v194, %v192
    %v196 = vsel %vm50, %v193, %v195
    %v197 = vld [vmem:[#allocation2] sm:$0xff]
    %198 = vmax.xlane.f32.xlu0 %v196
    %v199 = vpop.xlane.xlu0 %198
    %v200 = vmax.f32 %v197, %v199
    %v201 = vsub.f32 %v197, %v200
    %v202 = vmul.f32 %v201, 1.442695
    %v203 = vpow.pop %v202
    %v204 = vld [vmem:[#allocation3] sm:$0xff]
    %v205 = vmul.f32 %v203, %v204
    %207 = vset.pattern.permute.xlu0 0
    %208 = vperm.xlu0 %207, %v200
    %v209 = vpop.permute.xlu0 %208
    %v211 = vsub.f32 %v196, %v209
    %v212 = vmul.f32 %v211, 1.442695
    %v213 = vpow.pop %v212
    %214 = vadd.xlane.f32.xlu0 %v213
    %v215 = vpop.xlane.xlu0 %214
    %v216 = vadd.f32 %v205, %v215
    %vm217 = vcmask 7168
    %218 = vst.msk [vmem:[#allocation3] sm:$0xff] %vm217, %v216
    %219 = vst.msk [vmem:[#allocation2] sm:$0xff] %vm217, %v200
    %v220 = vld [vmem:[#allocation4] sm:$0xff]
    %v221 = vsel %vm56, %v193, 0.0
    %v222 = vadd.f32 %v220, %v221
    %223 = vst.msk [vmem:[#allocation4] sm:$0xff] %vm217, %v222
    // Predicated region
    $region22: #{tpu_custom_call.1} parent=1 // pred_check
      %p224 = pneg %p32
    $region23: #{tpu_custom_call.1} parent=1 // pred_check_branch
      %226 = sbr.rel (%p224) target = $region25
    $region24: #{tpu_custom_call.1} parent=1 // pred_region
      %v227 = vld [vmem:[#allocation2] sm:$0xff]
      %v228 = vld [vmem:[#allocation3] sm:$0xff]
      %v229 = vlog2.pop %v228
      %v230 = vmul.f32 %v229, 0.6931472
      %v231 = vadd.f32 %v227, %v230
      %v232 = vld [vmem:[#allocation4] sm:$0xff]
      %v233 = vsub.f32 %v231, %v232
      %234 = vst.msk [vmem:[%s3] sm:$0xff] %vm217, %v233
    $region25: #{tpu_custom_call.1} parent=1 // pred_fallthru
      _
    // Predicated region
    $region26: #{tpu_custom_call.1} parent=1 // pred_check
      _
    $region27: #{tpu_custom_call.1} parent=1 // pred_check_branch
      %236 = sbr.rel (0) target = $region29
    $region28: #{tpu_custom_call.1} parent=1 // pred_region
      _
    $region29: #{tpu_custom_call.1} parent=1 // pred_fallthru
      _
    // Predicated region
    $region30: #{tpu_custom_call.1} parent=1 // pred_check
      _
    $region31: #{tpu_custom_call.1} parent=1 // pred_check_branch
      %238 = sbr.rel (0) target = $region33
    $region32: #{tpu_custom_call.1} parent=1 // pred_region
      _
    $region33: #{tpu_custom_call.1} parent=1 // pred_fallthru
      _
    %239 = vsyncpa [#allocation6], 1

</llo_original>
